<compile_context>
chip_gen: v6e
topology: v6e:2x2x1
jax: 0.10.0
libtpu: 0.0.40
codegen_flags: <defaults>
</compile_context>

<pallas_src>
import functools

import jax
import jax.numpy as jnp
from jax.experimental import pallas as pl
from jax.experimental.pallas import tpu as pltpu


def _round_up(n, m):
    return ((n + m - 1) // m) * m


def _hdqn_kernel(x_ref, w1_ref, b1_ref, wh_ref, bh_ref, out_ref, *,
                 num_actions, out_pad):
    A = num_actions
    x = x_ref[...]

    # shared_fc: Linear + ReLU (MXU matmul, f32 accumulate). Padded hidden
    # columns have zero weights and zero bias -> relu(0) = 0 downstream.
    feat = jnp.dot(x, w1_ref[...], preferred_element_type=jnp.float32) + b1_ref[...]
    feat = jnp.maximum(feat, 0.0)

    # Fused heads: one [TB,Hp] @ [Hp,NW] matmul.
    # Column layout: [switch logits (2) | q1 (A) | q2 (A) | zero pad]
    heads = jnp.dot(feat.astype(wh_ref.dtype), wh_ref[...],
                    preferred_element_type=jnp.float32) + bh_ref[...]

    l0 = heads[:, 0:1]
    l1 = heads[:, 1:2]
    q1 = heads[:, 2:2 + A]
    q2 = heads[:, 2 + A:2 + 2 * A]

    # 2-class softmax via sigmoid (no XLU cross-lane reductions):
    #   p0 = exp(l0)/(exp(l0)+exp(l1)) = 1/(1+exp(l1-l0))
    p0 = pl.reciprocal(1.0 + jnp.exp(l1 - l0), approx=False)
    p1 = 1.0 - p0

    final_q = p0 * q1 + p1 * q2

    # Single lane-dense packed output: [final_q (A) | p0 p1 (2) | q1 (A) | q2 (A) | 0s]
    pieces = [final_q, p0, p1, q1, q2]
    if out_pad > 0:
        pieces.append(jnp.zeros((final_q.shape[0], out_pad), jnp.float32))
    out_ref[...] = jnp.concatenate(pieces, axis=-1).astype(out_ref.dtype)


def prepare_params(params, compute_dtype=jnp.float32):
    """One-time glue (run at init / param-update time, NOT per forward call).

    Transposes PyTorch [out,in] weights to [in,out], zero-pads the hidden dim
    to a multiple of 128, and fuses the three head weights/biases into one
    lane-padded slab. `compute_dtype` (f32 or bf16) applies to matmul inputs
    only; biases and accumulation stay f32.
    """
    H, IN = params["w1"].shape
    A = params["wq1"].shape[0]
    HP = _round_up(H, 128)
    NW = _round_up(2 + 2 * A, 128)

    w1 = jnp.zeros((IN, HP), compute_dtype)
    w1 = w1.at[:, :H].set(params["w1"].T.astype(compute_dtype))
    b1 = jnp.zeros((1, HP), jnp.float32).at[:, :H].set(params["b1"])

    wh = jnp.zeros((HP, NW), compute_dtype)
    wh = wh.at[:H, 0:2].set(params["ws"].T.astype(compute_dtype))
    wh = wh.at[:H, 2:2 + A].set(params["wq1"].T.astype(compute_dtype))
    wh = wh.at[:H, 2 + A:2 + 2 * A].set(params["wq2"].T.astype(compute_dtype))

    bh = jnp.zeros((1, NW), jnp.float32)
    bh = bh.at[:, 0:2].set(params["bs"])
    bh = bh.at[:, 2:2 + A].set(params["bq1"])
    bh = bh.at[:, 2 + A:2 + 2 * A].set(params["bq2"])

    return {"w1": w1, "b1": b1, "wh": wh, "bh": bh,
            "num_actions": int(A), "compute_dtype": compute_dtype}


def hierarchical_dqn_forward(x, prep, batch_tile=1024):
    """x: [B, in_features] float32. prep: output of prepare_params()."""
    B, IN = x.shape
    A = prep["num_actions"]
    cdt = prep["compute_dtype"]
    w1, b1, wh, bh = prep["w1"], prep["b1"], prep["wh"], prep["bh"]
    HP = w1.shape[1]
    NW = wh.shape[1]

    OUT_W = _round_up(3 * A + 2, 128)
    out_pad = OUT_W - (3 * A + 2)

    # Batch tile: full batch if small (legal as full-extent block), else a
    # multiple-of-8 tile small enough for v7x's 64 MiB VMEM even when
    # double-buffered (x + packed output are the only per-step buffers).
    TB = B if B <= batch_tile else batch_tile
    grid = (pl.cdiv(B, TB),)

    kernel = functools.partial(_hdqn_kernel, num_actions=A, out_pad=out_pad)

    out = pl.pallas_call(
        kernel,
        out_shape=jax.ShapeDtypeStruct((B, OUT_W), jnp.float32),
        grid=grid,
        in_specs=[
            pl.BlockSpec((TB, IN), lambda i: (i, 0)),   # x: tiled over batch
            pl.BlockSpec((IN, HP), lambda i: (0, 0)),   # weights: VMEM-resident
            pl.BlockSpec((1, HP), lambda i: (0, 0)),
            pl.BlockSpec((HP, NW), lambda i: (0, 0)),
            pl.BlockSpec((1, NW), lambda i: (0, 0)),
        ],
        out_specs=pl.BlockSpec((TB, OUT_W), lambda i: (i, 0)),
        compiler_params=pltpu.CompilerParams(
            dimension_semantics=("parallel",)),
    )(x.astype(cdt), w1, b1, wh, bh)

    final_q = out[:, 0:A]
    probs = out[:, A:A + 2]
    q1 = out[:, A + 2:2 * A + 2]
    q2 = out[:, 2 * A + 2:3 * A + 2]
    return final_q, probs, q1, q2


def init_params(key, in_features, num_actions, hidden_dim):
    """Deterministic synthetic init (PyTorch shapes: W is [out, in])."""
    ks = jax.random.split(key, 8)

    def lin(kw, kb, out_dim, in_dim):
        bound = 1.0 / jnp.sqrt(in_dim)
        w = jax.random.uniform(kw, (out_dim, in_dim), jnp.float32, -bound, bound)
        b = jax.random.uniform(kb, (out_dim,), jnp.float32, -bound, bound)
        return w, b

    w1, b1 = lin(ks[0], ks[1], hidden_dim, in_features)
    ws, bs = lin(ks[2], ks[3], 2, hidden_dim)
    wq1, bq1 = lin(ks[4], ks[5], num_actions, hidden_dim)
    wq2, bq2 = lin(ks[6], ks[7], num_actions, hidden_dim)
    return {"w1": w1, "b1": b1, "ws": ws, "bs": bs,
            "wq1": wq1, "bq1": bq1, "wq2": wq2, "bq2": bq2}


def _reference_forward(x, p):
    feat = jnp.maximum(x @ p["w1"].T + p["b1"], 0.0)
    logits = feat @ p["ws"].T + p["bs"]
    probs = jax.nn.softmax(logits, axis=-1)
    q1 = feat @ p["wq1"].T + p["bq1"]
    q2 = feat @ p["wq2"].T + p["bq2"]
    final_q = probs[:, 0:1] * q1 + probs[:, 1:2] * q2
    return final_q, probs, q1, q2


if __name__ == "__main__":
    B, IN, H, A = 2, 16, 32, 8
    key = jax.random.PRNGKey(0)
    kx, kp = jax.random.split(key)
    x = jax.random.normal(kx, (B, IN), jnp.float32)
    params = init_params(kp, IN, A, H)

    refs = _reference_forward(x, params)

    # f32 matmul path: must match the reference tightly.
    prep_f32 = prepare_params(params, jnp.float32)
    outs = jax.block_until_ready(hierarchical_dqn_forward(x, prep_f32))
    for o, r in zip(outs, refs):
        assert o.shape == r.shape and o.dtype == r.dtype
        assert jnp.allclose(o, r, atol=1e-5, rtol=1e-5)

    # bf16 matmul path (v5e/v6e MXU-native; f32 accumulation): loose check.
    prep_bf16 = prepare_params(params, jnp.bfloat16)
    outs_bf = jax.block_until_ready(hierarchical_dqn_forward(x, prep_bf16))
    for o, r in zip(outs_bf, refs):
        assert o.shape == r.shape
        assert jnp.allclose(o, r, atol=5e-2, rtol=5e-2)

    print("KERNEL_OK")
</pallas_src>

<mosaic_0001>
module attributes {stable_mosaic.version = 11 : i64} {
  func.func @_hdqn_kernel(%arg0: i32, %arg1: memref<2x16xf32, #tpu.memory_space<vmem>>, %arg2: memref<16x128xf32, #tpu.memory_space<vmem>>, %arg3: memref<1x128xf32, #tpu.memory_space<vmem>>, %arg4: memref<128x128xf32, #tpu.memory_space<vmem>>, %arg5: memref<1x128xf32, #tpu.memory_space<vmem>>, %arg6: memref<2x128xf32, #tpu.memory_space<vmem>>) attributes {dimension_semantics = [#tpu.dimension_semantics<parallel>], iteration_bounds = array<i64: 1>, scalar_prefetch = 0 : i64, scratch_operands = 0 : i64, tpu.core_type = #tpu.core_type<tc>, window_params = [{transform_indices = @transform_0, window_bounds = array<i64: 2, 16>}, {pipeline_mode = #tpu.pipeline_mode<synchronous>, transform_indices = @transform_1, window_bounds = array<i64: 16, 128>}, {pipeline_mode = #tpu.pipeline_mode<synchronous>, transform_indices = @transform_2, window_bounds = array<i64: 1, 128>}, {pipeline_mode = #tpu.pipeline_mode<synchronous>, transform_indices = @transform_3, window_bounds = array<i64: 128, 128>}, {pipeline_mode = #tpu.pipeline_mode<synchronous>, transform_indices = @transform_4, window_bounds = array<i64: 1, 128>}, {transform_indices = @transform_5, window_bounds = array<i64: 2, 128>}]} {
    %c0 = arith.constant 0 : index
    %c0_0 = arith.constant 0 : index
    %0 = vector.load %arg1[%c0, %c0_0] : memref<2x16xf32, #tpu.memory_space<vmem>>, vector<2x16xf32>
    %c0_1 = arith.constant 0 : index
    %c0_2 = arith.constant 0 : index
    %1 = vector.load %arg2[%c0_1, %c0_2] : memref<16x128xf32, #tpu.memory_space<vmem>>, vector<16x128xf32>
    %cst = arith.constant dense<0.000000e+00> : vector<2x128xf32>
    %2 = tpu.matmul %0, %1, %cst {dimension_numbers = #tpu.dot_dimension_numbers<[1], [0], [0], [1], [0, 0, 1, 1], [], []>} : vector<2x16xf32>, vector<16x128xf32>, vector<2x128xf32> -> vector<2x128xf32>
    %c0_3 = arith.constant 0 : index
    %c0_4 = arith.constant 0 : index
    %3 = vector.load %arg3[%c0_3, %c0_4] : memref<1x128xf32, #tpu.memory_space<vmem>>, vector<1x128xf32>
    %4 = vector.broadcast %3 : vector<1x128xf32> to vector<2x128xf32>
    %5 = arith.addf %2, %4 : vector<2x128xf32>
    %cst_5 = arith.constant 0.000000e+00 : f32
    %6 = vector.broadcast %cst_5 : f32 to vector<2x128xf32>
    %7 = arith.maximumf %5, %6 : vector<2x128xf32>
    %c0_6 = arith.constant 0 : index
    %c0_7 = arith.constant 0 : index
    %8 = vector.load %arg4[%c0_6, %c0_7] : memref<128x128xf32, #tpu.memory_space<vmem>>, vector<128x128xf32>
    %cst_8 = arith.constant dense<0.000000e+00> : vector<2x128xf32>
    %9 = tpu.matmul %7, %8, %cst_8 {dimension_numbers = #tpu.dot_dimension_numbers<[1], [0], [0], [1], [0, 0, 1, 1], [], []>} : vector<2x128xf32>, vector<128x128xf32>, vector<2x128xf32> -> vector<2x128xf32>
    %c0_9 = arith.constant 0 : index
    %c0_10 = arith.constant 0 : index
    %10 = vector.load %arg5[%c0_9, %c0_10] : memref<1x128xf32, #tpu.memory_space<vmem>>, vector<1x128xf32>
    %11 = vector.broadcast %10 : vector<1x128xf32> to vector<2x128xf32>
    %12 = arith.addf %9, %11 : vector<2x128xf32>
    %13 = vector.extract_strided_slice %12 {offsets = [0, 0], sizes = [2, 1], strides = [1, 1]} : vector<2x128xf32> to vector<2x1xf32>
    %14 = vector.extract_strided_slice %12 {offsets = [0, 1], sizes = [2, 1], strides = [1, 1]} : vector<2x128xf32> to vector<2x1xf32>
    %15 = vector.extract_strided_slice %12 {offsets = [0, 2], sizes = [2, 8], strides = [1, 1]} : vector<2x128xf32> to vector<2x8xf32>
    %16 = vector.extract_strided_slice %12 {offsets = [0, 10], sizes = [2, 8], strides = [1, 1]} : vector<2x128xf32> to vector<2x8xf32>
    %17 = arith.subf %14, %13 : vector<2x1xf32>
    %18 = math.exp %17 : vector<2x1xf32>
    %cst_11 = arith.constant 1.000000e+00 : f32
    %19 = vector.broadcast %cst_11 : f32 to vector<2x1xf32>
    %20 = arith.addf %19, %18 : vector<2x1xf32>
    %21 = tpu.reciprocal %20 : vector<2x1xf32> -> vector<2x1xf32>
    %cst_12 = arith.constant 1.000000e+00 : f32
    %22 = vector.broadcast %cst_12 : f32 to vector<2x1xf32>
    %23 = arith.subf %22, %21 : vector<2x1xf32>
    %24 = vector.broadcast %21 : vector<2x1xf32> to vector<2x8xf32>
    %25 = arith.mulf %24, %15 : vector<2x8xf32>
    %26 = vector.broadcast %23 : vector<2x1xf32> to vector<2x8xf32>
    %27 = arith.mulf %26, %16 : vector<2x8xf32>
    %28 = arith.addf %25, %27 : vector<2x8xf32>
    %cst_13 = arith.constant 0.000000e+00 : f32
    %29 = vector.broadcast %cst_13 : f32 to vector<2x102xf32>
    %30 = tpu.concatenate %28, %21, %23, %15, %16, %29 in 1 : vector<2x8xf32>, vector<2x1xf32>, vector<2x1xf32>, vector<2x8xf32>, vector<2x8xf32>, vector<2x102xf32> -> vector<2x128xf32>
    %c0_14 = arith.constant 0 : index
    %c0_15 = arith.constant 0 : index
    %31 = vector.load %arg6[%c0_14, %c0_15] : memref<2x128xf32, #tpu.memory_space<vmem>>, vector<2x128xf32>
    tpu.vector_store %arg6[%c0_14, %c0_15], %30 {strides = array<i32>} : memref<2x128xf32, #tpu.memory_space<vmem>>, vector<2x128xf32>,
    return
  }
  func.func @transform_0(%arg0: i32) -> (i32, i32) {
    %c0_i32 = arith.constant 0 : i32
    %c0_i32_0 = arith.constant 0 : i32
    return %arg0, %c0_i32 : i32, i32
  }
  func.func @transform_1(%arg0: i32) -> (i32, i32) {
    %c0_i32 = arith.constant 0 : i32
    %c0_i32_0 = arith.constant 0 : i32
    %c0_i32_1 = arith.constant 0 : i32
    return %c0_i32, %c0_i32_0 : i32, i32
  }
  func.func @transform_2(%arg0: i32) -> (i32, i32) {
    %c0_i32 = arith.constant 0 : i32
    %c0_i32_0 = arith.constant 0 : i32
    %c0_i32_1 = arith.constant 0 : i32
    return %c0_i32, %c0_i32_0 : i32, i32
  }
  func.func @transform_3(%arg0: i32) -> (i32, i32) {
    %c0_i32 = arith.constant 0 : i32
    %c0_i32_0 = arith.constant 0 : i32
    %c0_i32_1 = arith.constant 0 : i32
    return %c0_i32, %c0_i32_0 : i32, i32
  }
  func.func @transform_4(%arg0: i32) -> (i32, i32) {
    %c0_i32 = arith.constant 0 : i32
    %c0_i32_0 = arith.constant 0 : i32
    %c0_i32_1 = arith.constant 0 : i32
    return %c0_i32, %c0_i32_0 : i32, i32
  }
  func.func @transform_5(%arg0: i32) -> (i32, i32) {
    %c0_i32 = arith.constant 0 : i32
    %c0_i32_0 = arith.constant 0 : i32
    return %arg0, %c0_i32 : i32, i32
  }
}

</mosaic_0001>

<llo_original>
// kernel: tpu_custom_call.1
$region0: #{tpu_custom_call.1}
  #allocation0 [shape = 'u32[]', space=smem, size = 0x4, offset = 0x4, fixed_abs, tag = 'smem constant byte address 0x4 - core index']
  #allocation1 [shape = 'u32[144,128]{1,0:T(1,128)}', space=vmem, size = 0x12000, scoped, tag = 'internal scratch']
  %s0 = inlined_call_operand.hbm [shape: f32[2,16], index: 0, kind: input, shape index: {}]
  %s1 = inlined_call_operand.hbm [shape: f32[16,128], index: 1, kind: input, shape index: {}]
  %s2 = inlined_call_operand.vmem [shape: f32[1,128], index: 2, kind: input, shape index: {}]
  %s3 = inlined_call_operand.hbm [shape: f32[128,128], index: 3, kind: input, shape index: {}]
  %s4 = inlined_call_operand.vmem [shape: f32[1,128], index: 4, kind: input, shape index: {}]
  %s5 = inlined_call_operand.hbm [shape: f32[2,128], index: 5, kind: output, shape index: {}]
  %s6 = sld [smem:[#allocation0]]
  $region42: #{tpu_custom_call.1} parent=0
    _
  %s8 = ssub.s32 1, %s6
  %s9 = scalar_select 0, %s8, %s6
  $region1: #{tpu_custom_call.1} parent=0
    #allocation2 [shape = 'u8[1024]{0}', space=vmem, size = 0x400, scoped, tag = 'input window, operand 0, single buffered']
    #allocation3 [shape = 's32[1]{0}', space=sflag, size = 0x4, scoped, tag = 'scoped memory for tpu_custom_call.1']
    #allocation4 [shape = 's32[1]{0}', space=sflag, size = 0x4, scoped, tag = 'scoped memory for tpu_custom_call.1']
    #allocation5 [shape = 'u8[8192]{0}', space=vmem, size = 0x2000, scoped, tag = 'input window, operand 1, single buffered']
    #allocation6 [shape = 's32[1]{0}', space=sflag, size = 0x4, scoped, tag = 'scoped memory for tpu_custom_call.1']
    #allocation7 [shape = 'u8[65536]{0}', space=vmem, size = 0x10000, scoped, tag = 'input window, operand 3, single buffered']
    #allocation8 [shape = 'u8[1024]{0}', space=vmem, size = 0x400, scoped, tag = 'output window, operand 0, single buffered']
    %10 = vsyncpa [#allocation3], 0
    %11 = vsyncpa [#allocation6], 0
    %12 = vsyncpa [#allocation4], 0
    // Predicated region
    $region2: #{tpu_custom_call.1} parent=1 // pred_check
      _
    $region3: #{tpu_custom_call.1} parent=1 // pred_check_branch
      %14 = sbr.rel (0) target = $region5
    $region4: #{tpu_custom_call.1} parent=1 // pred_region
      %s16 = ssub.s32 32, 32
      %17 = vsyncadd [#allocation3], %s16
      %s19 = sshll.u32 [#allocation2], 4
      %s20 = int_to_ptr.vmem [resolvable:$true] %s19
      %22 = dma.hbm_to_vmem [thread:$0]  %s0, 32, %s20, [#allocation3]
    $region5: #{tpu_custom_call.1} parent=1 // pred_fallthru
      _
    // Predicated region
    $region6: #{tpu_custom_call.1} parent=1 // pred_check
      _
    $region7: #{tpu_custom_call.1} parent=1 // pred_check_branch
      %24 = sbr.rel (0) target = $region9
    $region8: #{tpu_custom_call.1} parent=1 // pred_region
      %s26 = ssub.s32 256, 256
      %27 = vsyncadd [#allocation6], %s26
      %s28 = sshll.u32 [#allocation5], 4
      %s29 = int_to_ptr.vmem [resolvable:$true] %s28
      %34 = dma.hbm_to_vmem [thread:$0]  %s1, 256, %s29, [#allocation6], 128, 128, 8
    $region9: #{tpu_custom_call.1} parent=1 // pred_fallthru
      _
    // Predicated region
    $region10: #{tpu_custom_call.1} parent=1 // pred_check
      _
    $region11: #{tpu_custom_call.1} parent=1 // pred_check_branch
      %36 = sbr.rel (0) target = $region13
    $region12: #{tpu_custom_call.1} parent=1 // pred_region
      _
    $region13: #{tpu_custom_call.1} parent=1 // pred_fallthru
      _
    // Predicated region
    $region14: #{tpu_custom_call.1} parent=1 // pred_check
      _
    $region15: #{tpu_custom_call.1} parent=1 // pred_check_branch
      %38 = sbr.rel (0) target = $region17
    $region16: #{tpu_custom_call.1} parent=1 // pred_region
      %s40 = ssub.s32 2048, 2048
      %41 = vsyncadd [#allocation6], %s40
      %s42 = sshll.u32 [#allocation7], 4
      %s43 = int_to_ptr.vmem [resolvable:$true] %s42
      %48 = dma.hbm_to_vmem [thread:$0]  %s3, 2048, %s43, [#allocation6], 128, 128, 8
    $region17: #{tpu_custom_call.1} parent=1 // pred_fallthru
      _
    // Predicated region
    $region18: #{tpu_custom_call.1} parent=1 // pred_check
      _
    $region19: #{tpu_custom_call.1} parent=1 // pred_check_branch
      %50 = sbr.rel (0) target = $region21
    $region20: #{tpu_custom_call.1} parent=1 // pred_region
      _
    $region21: #{tpu_custom_call.1} parent=1 // pred_fallthru
      _
    // Predicated region
    $region22: #{tpu_custom_call.1} parent=1 // pred_check
      _
    $region23: #{tpu_custom_call.1} parent=1 // pred_check_branch
      %52 = sbr.rel (0) target = $region25
    $region24: #{tpu_custom_call.1} parent=1 // pred_region
      %53 = dma.done [#allocation3], 32
    $region25: #{tpu_custom_call.1} parent=1 // pred_fallthru
      _
    // Predicated region
    $region26: #{tpu_custom_call.1} parent=1 // pred_check
      _
    $region27: #{tpu_custom_call.1} parent=1 // pred_check_branch
      %55 = sbr.rel (0) target = $region29
    $region28: #{tpu_custom_call.1} parent=1 // pred_region
      %56 = dma.done [#allocation6], 256
    $region29: #{tpu_custom_call.1} parent=1 // pred_fallthru
      _
    // Predicated region
    $region30: #{tpu_custom_call.1} parent=1 // pred_check
      _
    $region31: #{tpu_custom_call.1} parent=1 // pred_check_branch
      %58 = sbr.rel (0) target = $region33
    $region32: #{tpu_custom_call.1} parent=1 // pred_region
      %59 = dma.done [#allocation6], 2048
    $region33: #{tpu_custom_call.1} parent=1 // pred_fallthru
      _
    %v60 = vld [vmem:[#allocation2] sm:$0x3]
    %v61 = vld [vmem:[#allocation5] sm:$0xff]
    %v62 = vld [vmem:[#allocation5 + $0x8] sm:$0xff]
    %v63 = vld [vmem:[%s2] sm:$0x1]
    %v65 = vlaneseq
    %v66 = vshrl.u32 %v65, 7
    %v67 = vsub.s32 0, %v66
    %v68 = vrot.slane %v63, %v67
    %vm70 = vcmask 130048
    %v72 = vsel %vm70, %v60, 0
    %74 = vmatprep.subr.mxu0 0.0
    %75 = vmatpush1.msra.mxu0 0.0
    %76 = vmatprep.subr.mxu0 0.0
    %77 = vmatpush1.msra.mxu0 0.0
    %78 = vmatprep.subr.mxu0 0.0
    %79 = vmatpush1.msra.mxu0 0.0
    %80 = vmatprep.subr.mxu0 0.0
    %81 = vmatpush1.msra.mxu0 0.0
    %82 = vmatprep.subr.mxu0 0.0
    %83 = vmatpush1.msra.mxu0 0.0
    %84 = vmatprep.subr.mxu0 0.0
    %85 = vmatpush1.msra.mxu0 0.0
    %86 = vmatprep.subr.mxu0 0.0
    %87 = vmatpush1.msra.mxu0 0.0
    %88 = vmatprep.subr.mxu0 0.0
    %89 = vmatpush1.msra.mxu0 0.0
    %90 = vmatprep.subr.mxu0 0.0
    %91 = vmatpush1.msra.mxu0 0.0
    %92 = vmatprep.subr.mxu0 0.0
    %93 = vmatpush1.msra.mxu0 0.0
    %94 = vmatprep.subr.mxu0 0.0
    %95 = vmatpush1.msra.mxu0 0.0
    %96 = vmatprep.subr.mxu0 0.0
    %97 = vmatpush1.msra.mxu0 0.0
    %98 = vmatprep.subr.mxu0 0.0
    %99 = vmatpush1.msra.mxu0 0.0
    %100 = vmatprep.subr.mxu0 0.0
    %101 = vmatpush1.msra.mxu0 0.0
    %102 = vmatprep.subr.mxu0 0.0
    %103 = vmatpush1.msra.mxu0 %v62
    %104 = vmatprep.subr.mxu0 0.0
    %105 = vmatpush1.msra.mxu0 %v61
    %106 = vmatprep.subr.mxu0 0.0
    %107 = vmatpush2.msra.mxu0 0.0
    %108 = vmatprep.subr.mxu0 0.0
    %109 = vmatpush2.msra.mxu0 0.0
    %110 = vmatprep.subr.mxu0 0.0
    %111 = vmatpush2.msra.mxu0 0.0
    %112 = vmatprep.subr.mxu0 0.0
    %113 = vmatpush2.msra.mxu0 0.0
    %114 = vmatprep.subr.mxu0 0.0
    %115 = vmatpush2.msra.mxu0 0.0
    %116 = vmatprep.subr.mxu0 0.0
    %117 = vmatpush2.msra.mxu0 0.0
    %118 = vmatprep.subr.mxu0 0.0
    %119 = vmatpush2.msra.mxu0 0.0
    %120 = vmatprep.subr.mxu0 0.0
    %121 = vmatpush2.msra.mxu0 0.0
    %122 = vmatprep.subr.mxu0 0.0
    %123 = vmatpush2.msra.mxu0 0.0
    %124 = vmatprep.subr.mxu0 0.0
    %125 = vmatpush2.msra.mxu0 0.0
    %126 = vmatprep.subr.mxu0 0.0
    %127 = vmatpush2.msra.mxu0 0.0
    %128 = vmatprep.subr.mxu0 0.0
    %129 = vmatpush2.msra.mxu0 0.0
    %130 = vmatprep.subr.mxu0 0.0
    %131 = vmatpush2.msra.mxu0 0.0
    %132 = vmatprep.subr.mxu0 0.0
    %133 = vmatpush2.msra.mxu0 0.0
    %134 = vmatprep.subr.mxu0 0.0
    %135 = vmatpush2.msra.mxu0 0.0
    %136 = vmatprep.subr.mxu0 0.0
    %137 = vmatpush2.msra.mxu0 0.0
    %138 = vmatprep.mubr.f32.mxu0 0.0
    %139 = vmatmul.mubr.f32.gmra.mxu0 %v72
    %v140 = vpop.f32.mrf.mxu0
    %v141 = vadd.f32 %v68, %v140
    %v142 = vpop.f32.mrf.mxu0
    %143 = vdwg.mxu0
    %v144 = vmax.f32 %v141, 0.0
    %v145 = vld [vmem:[#allocation7] sm:$0xff]
    %v146 = vld [vmem:[#allocation7 + $0x8] sm:$0xff]
    %v147 = vld [vmem:[#allocation7 + $0x10] sm:$0xff]
    %v148 = vld [vmem:[#allocation7 + $0x18] sm:$0xff]
    %v149 = vld [vmem:[#allocation7 + $0x20] sm:$0xff]
    %v150 = vld [vmem:[#allocation7 + $0x28] sm:$0xff]
    %v151 = vld [vmem:[#allocation7 + $0x30] sm:$0xff]
    %v152 = vld [vmem:[#allocation7 + $0x38] sm:$0xff]
    %v153 = vld [vmem:[#allocation7 + $0x40] sm:$0xff]
    %v154 = vld [vmem:[#allocation7 + $0x48] sm:$0xff]
    %v155 = vld [vmem:[#allocation7 + $0x50] sm:$0xff]
    %v156 = vld [vmem:[#allocation7 + $0x58] sm:$0xff]
    %v157 = vld [vmem:[#allocation7 + $0x60] sm:$0xff]
    %v158 = vld [vmem:[#allocation7 + $0x68] sm:$0xff]
    %v159 = vld [vmem:[#allocation7 + $0x70] sm:$0xff]
    %v160 = vld [vmem:[#allocation7 + $0x78] sm:$0xff]
    %v161 = vld [vmem:[%s4] sm:$0x1]
    %v163 = vlaneseq
    %v164 = vshrl.u32 %v163, 7
    %v165 = vsub.s32 0, %v164
    %v166 = vrot.slane %v161, %v165
    %168 = vmatprep.subr.mxu0 0.0
    %169 = vmatpush1.msra.mxu0 %v160
    %170 = vmatprep.subr.mxu0 0.0
    %171 = vmatpush1.msra.mxu0 %v159
    %172 = vmatprep.subr.mxu0 0.0
    %173 = vmatpush1.msra.mxu0 %v158
    %174 = vmatprep.subr.mxu0 0.0
    %175 = vmatpush1.msra.mxu0 %v157
    %176 = vmatprep.subr.mxu0 0.0
    %177 = vmatpush1.msra.mxu0 %v156
    %178 = vmatprep.subr.mxu0 0.0
    %179 = vmatpush1.msra.mxu0 %v155
    %180 = vmatprep.subr.mxu0 0.0
    %181 = vmatpush1.msra.mxu0 %v154
    %182 = vmatprep.subr.mxu0 0.0
    %183 = vmatpush1.msra.mxu0 %v153
    %184 = vmatprep.subr.mxu0 0.0
    %185 = vmatpush1.msra.mxu0 %v152
    %186 = vmatprep.subr.mxu0 0.0
    %187 = vmatpush1.msra.mxu0 %v151
    %188 = vmatprep.subr.mxu0 0.0
    %189 = vmatpush1.msra.mxu0 %v150
    %190 = vmatprep.subr.mxu0 0.0
    %191 = vmatpush1.msra.mxu0 %v149
    %192 = vmatprep.subr.mxu0 0.0
    %193 = vmatpush1.msra.mxu0 %v148
    %194 = vmatprep.subr.mxu0 0.0
    %195 = vmatpush1.msra.mxu0 %v147
    %196 = vmatprep.subr.mxu0 0.0
    %197 = vmatpush1.msra.mxu0 %v146
    %198 = vmatprep.subr.mxu0 0.0
    %199 = vmatpush1.msra.mxu0 %v145
    %200 = vmatprep.subr.mxu0 0.0
    %201 = vmatpush2.msra.mxu0 0.0
    %202 = vmatprep.subr.mxu0 0.0
    %203 = vmatpush2.msra.mxu0 0.0
    %204 = vmatprep.subr.mxu0 0.0
    %205 = vmatpush2.msra.mxu0 0.0
    %206 = vmatprep.subr.mxu0 0.0
    %207 = vmatpush2.msra.mxu0 0.0
    %208 = vmatprep.subr.mxu0 0.0
    %209 = vmatpush2.msra.mxu0 0.0
    %210 = vmatprep.subr.mxu0 0.0
    %211 = vmatpush2.msra.mxu0 0.0
    %212 = vmatprep.subr.mxu0 0.0
    %213 = vmatpush2.msra.mxu0 0.0
    %214 = vmatprep.subr.mxu0 0.0
    %215 = vmatpush2.msra.mxu0 0.0
    %216 = vmatprep.subr.mxu0 0.0
    %217 = vmatpush2.msra.mxu0 0.0
    %218 = vmatprep.subr.mxu0 0.0
    %219 = vmatpush2.msra.mxu0 0.0
    %220 = vmatprep.subr.mxu0 0.0
    %221 = vmatpush2.msra.mxu0 0.0
    %222 = vmatprep.subr.mxu0 0.0
    %223 = vmatpush2.msra.mxu0 0.0
    %224 = vmatprep.subr.mxu0 0.0
    %225 = vmatpush2.msra.mxu0 0.0
    %226 = vmatprep.subr.mxu0 0.0
    %227 = vmatpush2.msra.mxu0 0.0
    %228 = vmatprep.subr.mxu0 0.0
    %229 = vmatpush2.msra.mxu0 0.0
    %230 = vmatprep.subr.mxu0 0.0
    %231 = vmatpush2.msra.mxu0 0.0
    %232 = vmatprep.mubr.f32.mxu0 0.0
    %233 = vmatmul.mubr.f32.gmra.mxu0 %v144
    %v234 = vpop.f32.mrf.mxu0
    %v235 = vadd.f32 %v166, %v234
    %v236 = vpop.f32.mrf.mxu0
    %237 = vdwg.mxu0
    %239 = vrot.lane.b32.xlu0 %v235, 1
    %v240 = vpop.permute.xlu0 %239
    %v242 = vsub.f32 %v235, %v240
    %v243 = vmul.f32 %v242, 1.442695
    %v244 = vpow.pop %v243
    %v245 = vadd.f32 %v244, 1.0
    %v246 = vrcp.pop %v245
    %v247 = vsub.f32 1.0, %v246
    %249 = vset.pattern.permute.xlu0 1
    %250 = vperm.xlu0 %249, %v246
    %v251 = vpop.permute.xlu0 %250
    %v253 = vmul.f32 %v251, %v235
    %255 = vset.pattern.permute.xlu0 1
    %256 = vperm.xlu0 %255, %v247
    %v257 = vpop.permute.xlu0 %256
    %v259 = vmul.f32 %v257, %v235
    %261 = vrot.lane.b32.xlu0 %v259, 120
    %v262 = vpop.permute.xlu0 %261
    %v264 = vadd.f32 %v253, %v262
    %266 = vrot.lane.b32.xlu0 %v264, 126
    %v267 = vpop.permute.xlu0 %266
    %269 = vrot.lane.b32.xlu0 %v246, 7
    %v270 = vpop.permute.xlu0 %269
    %272 = vrot.lane.b32.xlu0 %v247, 8
    %v273 = vpop.permute.xlu0 %272
    %275 = vrot.lane.b32.xlu0 %v235, 8
    %v276 = vpop.permute.xlu0 %275
    %vm278 = vcmask 64512
    %v279 = vsel %vm278, %v267, %v270
    %vm280 = vcmask 72704
    %v281 = vsel %vm280, %v279, %v273
    %vm282 = vcmask 80896
    %v283 = vsel %vm282, %v281, %v276
    %vm284 = vcmask 146432
    %v285 = vsel %vm284, %v283, %v276
    %vm286 = vcmask 211968
    %v287 = vsel %vm286, %v285, 0.0
    %288 = vst [vmem:[#allocation8] sm:$0x3] %v287
    // Predicated region
    $region34: #{tpu_custom_call.1} parent=1 // pred_check
      _
    $region35: #{tpu_custom_call.1} parent=1 // pred_check_branch
      %290 = sbr.rel (0) target = $region37
    $region36: #{tpu_custom_call.1} parent=1 // pred_region
      %s292 = ssub.s32 32, 32
      %293 = vsyncadd [#allocation4], %s292
      %s295 = sshll.u32 [#allocation8], 4
      %s296 = int_to_ptr.vmem [resolvable:$true] %s295
      %298 = dma.vmem_to_hbm [thread:$0]  %s296, 32, %s5, [#allocation4]
    $region37: #{tpu_custom_call.1} parent=1 // pred_fallthru
      _
    // Predicated region
    $region38: #{tpu_custom_call.1} parent=1 // pred_check
      _
    $region39: #{tpu_custom_call.1} parent=1 // pred_check_branch
      %300 = sbr.rel (0) target = $region41
    $region40: #{tpu_custom_call.1} parent=1 // pred_region
      %301 = dma.done [#allocation4], 32
    $region41: #{tpu_custom_call.1} parent=1 // pred_fallthru
      _
    %302 = vsyncpa [#allocation3], 1
    %303 = vsyncpa [#allocation6], 1
    %304 = vsyncpa [#allocation4], 1

</llo_original>
